<compile_context>
chip_gen: v5e
topology: v5e:2x2
jax: 0.10.0
libtpu: 0.0.40
codegen_flags: <defaults>
</compile_context>

<pallas_src>
import functools

import jax
import jax.numpy as jnp
import numpy as np
from jax.experimental import pallas as pl
from jax.experimental.pallas import tpu as pltpu


def _channel_attention_kernel(x_ref, w1_ref, w2_ref, out_ref,
                              sum_ref, max_ref, *, inv_hw):
    # x_ref  : (C, TL)   spatial tile (flattened H*W) of one batch element
    # w1_ref : (Cm, C)   first 1x1 conv weight (bias=False)
    # w2_ref : (C, Cm)   second 1x1 conv weight (bias=False)
    # out_ref: (C, 1)    sigmoid(ca(max)+ca(avg)) for this batch element
    # sum_ref/max_ref: (C, 1) f32 accumulators (persist across the t axis)
    t = pl.program_id(1)

    @pl.when(t == 0)
    def _init():
        sum_ref[...] = jnp.zeros_like(sum_ref)
        max_ref[...] = jnp.full_like(max_ref, -jnp.inf)

    xb = x_ref[...].astype(jnp.float32)                       # per-tile upcast
    sum_ref[...] += jnp.sum(xb, axis=1, keepdims=True)        # (C, 1)
    max_ref[...] = jnp.maximum(max_ref[...],
                               jnp.max(xb, axis=1, keepdims=True))

    @pl.when(t == pl.num_programs(1) - 1)
    def _finalize():
        avg_col = sum_ref[...] * inv_hw                       # (C, 1)
        max_col = max_ref[...]                                # (C, 1)
        pooled = jnp.concatenate([max_col, avg_col], axis=1)  # (C, 2)
        w1 = w1_ref[...].astype(jnp.float32)                  # (Cm, C)
        w2 = w2_ref[...].astype(jnp.float32)                  # (C, Cm)
        hidden = jnp.maximum(
            jnp.dot(w1, pooled, preferred_element_type=jnp.float32), 0.0)
        proj = jnp.dot(w2, hidden, preferred_element_type=jnp.float32)  # (C,2)
        att = proj[:, 0:1] + proj[:, 1:2]                     # ca(max)+ca(avg)
        out_ref[...] = jax.nn.sigmoid(att).astype(out_ref.dtype)


def _spatial_tile(hw, max_tile=2048):
    """Largest divisor of hw that is <= max_tile (keeps blocks divisible)."""
    if hw <= max_tile:
        return hw
    best = 1
    for t in range(1, max_tile + 1):
        if hw % t == 0:
            best = t
    return best


def channel_attention(x, params):
    """x: (N, C, H, W); params: {'w1': (C//r, C), 'w2': (C, C//r)}."""
    N, C, H, W = x.shape
    w1 = params["w1"]
    w2 = params["w2"]
    Cm = w1.shape[0]
    assert w1.shape == (Cm, C) and w2.shape == (C, Cm)

    HW = H * W
    TL = _spatial_tile(HW)
    num_t = HW // TL

    # Lane-dense layout: flattened spatial axis on the lane dimension.
    x_flat = x.reshape(N, C, HW)

    kernel = functools.partial(_channel_attention_kernel, inv_hw=1.0 / HW)

    out = pl.pallas_call(
        kernel,
        out_shape=jax.ShapeDtypeStruct((N, C, 1), x.dtype),
        grid=(N, num_t),
        in_specs=[
            pl.BlockSpec((None, C, TL), lambda n, t: (n, 0, t)),
            pl.BlockSpec((Cm, C), lambda n, t: (0, 0)),   # resident weights
            pl.BlockSpec((C, Cm), lambda n, t: (0, 0)),
        ],
        out_specs=pl.BlockSpec((None, C, 1), lambda n, t: (n, 0, 0)),
        scratch_shapes=[
            pltpu.VMEM((C, 1), jnp.float32),   # running sum
            pltpu.VMEM((C, 1), jnp.float32),   # running max
        ],
        compiler_params=pltpu.CompilerParams(
            dimension_semantics=("parallel", "arbitrary")),
    )(x_flat, w1, w2)

    return out.reshape(N, C, 1, 1)


def init_params(key, dim, reduction=8):
    # PyTorch Conv2d default init: uniform(-1/sqrt(fan_in), 1/sqrt(fan_in)).
    mid = dim // reduction
    assert mid >= 1, "dim must be >= reduction"
    k1, k2 = jax.random.split(key)

    def u(k, shape, fan_in):
        bound = 1.0 / float(np.sqrt(fan_in))
        return jax.random.uniform(k, shape, jnp.float32, -bound, bound)

    return {
        "w1": u(k1, (mid, dim), dim),   # Conv2d(dim, dim//r, 1, bias=False)
        "w2": u(k2, (dim, mid), mid),   # Conv2d(dim//r, dim, 1, bias=False)
    }


def reference(x, params):
    # Pure-JAX reference mirroring the PyTorch forward exactly.
    w1, w2 = params["w1"], params["w2"]
    max_p = jnp.max(x, axis=(2, 3))    # (N, C)
    avg_p = jnp.mean(x, axis=(2, 3))   # (N, C)

    def ca(v):                         # v: (N, C)
        h = jnp.maximum(v @ w1.T, 0.0)
        return h @ w2.T

    att = jax.nn.sigmoid(ca(max_p) + ca(avg_p))
    return att.reshape(att.shape[0], att.shape[1], 1, 1)


if __name__ == "__main__":
    key = jax.random.PRNGKey(0)
    kx, kp = jax.random.split(key)

    N, C, H, W = 2, 32, 16, 16       # C=32 so dim//reduction = 4 (reduction=8)
    reduction = 8

    x = jax.random.normal(kx, (N, C, H, W), dtype=jnp.float32)
    params = init_params(kp, C, reduction)

    out = jax.block_until_ready(channel_attention(x, params))
    ref = jax.block_until_ready(reference(x, params))

    assert out.shape == (N, C, 1, 1), out.shape
    np.testing.assert_allclose(np.asarray(out), np.asarray(ref),
                               rtol=1e-4, atol=1e-5)
    print("KERNEL_OK")
</pallas_src>

<mosaic_0001>
module attributes {stable_mosaic.version = 11 : i64} {
  func.func @_channel_attention_kernel(%arg0: i32, %arg1: i32, %arg2: memref<1x32x256xf32, #tpu.memory_space<vmem>>, %arg3: memref<4x32xf32, #tpu.memory_space<vmem>>, %arg4: memref<32x4xf32, #tpu.memory_space<vmem>>, %arg5: memref<1x32x1xf32, #tpu.memory_space<vmem>>, %arg6: memref<32x1xf32, #tpu.memory_space<vmem>>, %arg7: memref<32x1xf32, #tpu.memory_space<vmem>>) attributes {dimension_semantics = [#tpu.dimension_semantics<parallel>, #tpu.dimension_semantics<arbitrary>], iteration_bounds = array<i64: 2, 1>, scalar_prefetch = 0 : i64, scratch_operands = 2 : i64, tpu.core_type = #tpu.core_type<tc>, window_params = [{transform_indices = @transform_0, window_bounds = array<i64: 1, 32, 256>}, {pipeline_mode = #tpu.pipeline_mode<synchronous>, transform_indices = @transform_1, window_bounds = array<i64: 4, 32>}, {pipeline_mode = #tpu.pipeline_mode<synchronous>, transform_indices = @transform_2, window_bounds = array<i64: 32, 4>}, {transform_indices = @transform_3, window_bounds = array<i64: 1, 32, 1>}]} {
    %c0_i32 = arith.constant 0 : i32
    %0 = arith.cmpi eq, %arg1, %c0_i32 : i32
    %1 = arith.extui %0 : i1 to i32
    %c0_i32_0 = arith.constant 0 : i32
    %2 = arith.cmpi ne, %1, %c0_i32_0 : i32
    scf.if %2 {
      %cst_14 = arith.constant 0.000000e+00 : f32
      %18 = vector.broadcast %cst_14 : f32 to vector<32x1xf32>
      %c0_15 = arith.constant 0 : index
      %c0_16 = arith.constant 0 : index
      %19 = vector.load %arg6[%c0_15, %c0_16] : memref<32x1xf32, #tpu.memory_space<vmem>>, vector<32x1xf32>
      tpu.vector_store %arg6[%c0_15, %c0_16], %18 {strides = array<i32>} : memref<32x1xf32, #tpu.memory_space<vmem>>, vector<32x1xf32>,
      %cst_17 = arith.constant 0xFF800000 : f32
      %20 = vector.broadcast %cst_17 : f32 to vector<32x1xf32>
      %c0_18 = arith.constant 0 : index
      %c0_19 = arith.constant 0 : index
      %21 = vector.load %arg7[%c0_18, %c0_19] : memref<32x1xf32, #tpu.memory_space<vmem>>, vector<32x1xf32>
      tpu.vector_store %arg7[%c0_18, %c0_19], %20 {strides = array<i32>} : memref<32x1xf32, #tpu.memory_space<vmem>>, vector<32x1xf32>,
    } else {
    }
    %c0 = arith.constant 0 : index
    %c0_1 = arith.constant 0 : index
    %c0_2 = arith.constant 0 : index
    %3 = vector.load %arg2[%c0, %c0_1, %c0_2] : memref<1x32x256xf32, #tpu.memory_space<vmem>>, vector<1x32x256xf32>
    %4 = vector.shape_cast %3 : vector<1x32x256xf32> to vector<32x256xf32>
    %c0_3 = arith.constant 0 : index
    %c0_4 = arith.constant 0 : index
    %5 = vector.load %arg6[%c0_3, %c0_4] : memref<32x1xf32, #tpu.memory_space<vmem>>, vector<32x1xf32>
    %cst = arith.constant dense<0.000000e+00> : vector<32xf32>
    %6 = vector.multi_reduction <add>, %4, %cst [1] : vector<32x256xf32> to vector<32xf32>
    %7 = vector.shape_cast %6 : vector<32xf32> to vector<32x1xf32>
    %8 = arith.addf %5, %7 : vector<32x1xf32>
    %c0_5 = arith.constant 0 : index
    %c0_6 = arith.constant 0 : index
    %9 = vector.load %arg6[%c0_5, %c0_6] : memref<32x1xf32, #tpu.memory_space<vmem>>, vector<32x1xf32>
    tpu.vector_store %arg6[%c0_5, %c0_6], %8 {strides = array<i32>} : memref<32x1xf32, #tpu.memory_space<vmem>>, vector<32x1xf32>,
    %c0_7 = arith.constant 0 : index
    %c0_8 = arith.constant 0 : index
    %10 = vector.load %arg7[%c0_7, %c0_8] : memref<32x1xf32, #tpu.memory_space<vmem>>, vector<32x1xf32>
    %cst_9 = arith.constant dense<0xFF800000> : vector<32xf32>
    %11 = vector.multi_reduction <maximumf>, %4, %cst_9 [1] : vector<32x256xf32> to vector<32xf32>
    %12 = vector.shape_cast %11 : vector<32xf32> to vector<32x1xf32>
    %13 = arith.maximumf %10, %12 : vector<32x1xf32>
    %c0_10 = arith.constant 0 : index
    %c0_11 = arith.constant 0 : index
    %14 = vector.load %arg7[%c0_10, %c0_11] : memref<32x1xf32, #tpu.memory_space<vmem>>, vector<32x1xf32>
    tpu.vector_store %arg7[%c0_10, %c0_11], %13 {strides = array<i32>} : memref<32x1xf32, #tpu.memory_space<vmem>>, vector<32x1xf32>,
    %c0_i32_12 = arith.constant 0 : i32
    %15 = arith.cmpi eq, %arg1, %c0_i32_12 : i32
    %16 = arith.extui %15 : i1 to i32
    %c0_i32_13 = arith.constant 0 : i32
    %17 = arith.cmpi ne, %16, %c0_i32_13 : i32
    scf.if %17 {
      %c0_14 = arith.constant 0 : index
      %c0_15 = arith.constant 0 : index
      %18 = vector.load %arg6[%c0_14, %c0_15] : memref<32x1xf32, #tpu.memory_space<vmem>>, vector<32x1xf32>
      %cst_16 = arith.constant 3.906250e-03 : f32
      %19 = vector.broadcast %cst_16 : f32 to vector<32x1xf32>
      %20 = arith.mulf %18, %19 : vector<32x1xf32>
      %c0_17 = arith.constant 0 : index
      %c0_18 = arith.constant 0 : index
      %21 = vector.load %arg7[%c0_17, %c0_18] : memref<32x1xf32, #tpu.memory_space<vmem>>, vector<32x1xf32>
      %22 = tpu.concatenate %21, %20 in 1 : vector<32x1xf32>, vector<32x1xf32> -> vector<32x2xf32>
      %c0_19 = arith.constant 0 : index
      %c0_20 = arith.constant 0 : index
      %23 = vector.load %arg3[%c0_19, %c0_20] : memref<4x32xf32, #tpu.memory_space<vmem>>, vector<4x32xf32>
      %c0_21 = arith.constant 0 : index
      %c0_22 = arith.constant 0 : index
      %24 = vector.load %arg4[%c0_21, %c0_22] : memref<32x4xf32, #tpu.memory_space<vmem>>, vector<32x4xf32>
      %cst_23 = arith.constant dense<0.000000e+00> : vector<4x2xf32>
      %25 = tpu.matmul %23, %22, %cst_23 {dimension_numbers = #tpu.dot_dimension_numbers<[1], [0], [0], [1], [0, 0, 1, 1], [], []>} : vector<4x32xf32>, vector<32x2xf32>, vector<4x2xf32> -> vector<4x2xf32>
      %cst_24 = arith.constant 0.000000e+00 : f32
      %26 = vector.broadcast %cst_24 : f32 to vector<4x2xf32>
      %27 = arith.maximumf %25, %26 : vector<4x2xf32>
      %cst_25 = arith.constant dense<0.000000e+00> : vector<32x2xf32>
      %28 = tpu.matmul %24, %27, %cst_25 {dimension_numbers = #tpu.dot_dimension_numbers<[1], [0], [0], [1], [0, 0, 1, 1], [], []>} : vector<32x4xf32>, vector<4x2xf32>, vector<32x2xf32> -> vector<32x2xf32>
      %29 = vector.extract_strided_slice %28 {offsets = [0, 0], sizes = [32, 1], strides = [1, 1]} : vector<32x2xf32> to vector<32x1xf32>
      %30 = vector.extract_strided_slice %28 {offsets = [0, 1], sizes = [32, 1], strides = [1, 1]} : vector<32x2xf32> to vector<32x1xf32>
      %31 = arith.addf %29, %30 : vector<32x1xf32>
      %32 = arith.negf %31 : vector<32x1xf32>
      %33 = math.exp %32 : vector<32x1xf32>
      %cst_26 = arith.constant 1.000000e+00 : f32
      %34 = vector.broadcast %cst_26 : f32 to vector<32x1xf32>
      %35 = arith.addf %34, %33 : vector<32x1xf32>
      %36 = arith.divf %34, %35 : vector<32x1xf32>
      %c0_27 = arith.constant 0 : index
      %c0_28 = arith.constant 0 : index
      %c0_29 = arith.constant 0 : index
      %37 = vector.load %arg5[%c0_27, %c0_28, %c0_29] : memref<1x32x1xf32, #tpu.memory_space<vmem>>, vector<1x32x1xf32>
      %38 = vector.shape_cast %37 : vector<1x32x1xf32> to vector<32x1xf32>
      %39 = vector.shape_cast %36 : vector<32x1xf32> to vector<1x32x1xf32>
      tpu.vector_store %arg5[%c0_27, %c0_28, %c0_29], %39 {strides = array<i32>} : memref<1x32x1xf32, #tpu.memory_space<vmem>>, vector<1x32x1xf32>,
    } else {
    }
    return
  }
  func.func @transform_0(%arg0: i32, %arg1: i32) -> (i32, i32, i32) {
    %c0_i32 = arith.constant 0 : i32
    %c0_i32_0 = arith.constant 0 : i32
    return %arg0, %c0_i32, %arg1 : i32, i32, i32
  }
  func.func @transform_1(%arg0: i32, %arg1: i32) -> (i32, i32) {
    %c0_i32 = arith.constant 0 : i32
    %c0_i32_0 = arith.constant 0 : i32
    %c0_i32_1 = arith.constant 0 : i32
    return %c0_i32, %c0_i32_0 : i32, i32
  }
  func.func @transform_2(%arg0: i32, %arg1: i32) -> (i32, i32) {
    %c0_i32 = arith.constant 0 : i32
    %c0_i32_0 = arith.constant 0 : i32
    %c0_i32_1 = arith.constant 0 : i32
    return %c0_i32, %c0_i32_0 : i32, i32
  }
  func.func @transform_3(%arg0: i32, %arg1: i32) -> (i32, i32, i32) {
    %c0_i32 = arith.constant 0 : i32
    %c0_i32_0 = arith.constant 0 : i32
    %c0_i32_1 = arith.constant 0 : i32
    return %arg0, %c0_i32, %c0_i32_0 : i32, i32, i32
  }
}

</mosaic_0001>

<llo_original>
// kernel: tpu_custom_call.1
$region0: #{tpu_custom_call.1}
  #allocation0 [shape = 'u32[]', space=smem, size = 0x4, offset = 0x4, fixed_abs, tag = 'smem constant byte address 0x4 - core index']
  #allocation1 [shape = 'u32[72,128]{1,0:T(1,128)}', space=vmem, size = 0x9000, scoped, tag = 'internal scratch']
  #allocation2 [shape = 'f32[32,1]{1,0:T(8,128)}', space=vmem, size = 0x4000, scoped, tag = 'scratch operand']
  #allocation3 [shape = 'f32[32,1]{1,0:T(8,128)}', space=vmem, size = 0x4000, scoped, tag = 'scratch operand']
  %s0 = inlined_call_operand.hbm [shape: f32[2,32,256], index: 0, kind: input, shape index: {}]
  %s1 = inlined_call_operand.vmem [shape: f32[4,32], index: 1, kind: input, shape index: {}]
  %s2 = inlined_call_operand.vmem [shape: f32[32,4], index: 2, kind: input, shape index: {}]
  %s3 = inlined_call_operand.vmem [shape: f32[2,32,1], index: 3, kind: output, shape index: {}]
  %s4 = sld [smem:[#allocation0]]
  $region57: #{tpu_custom_call.1} parent=0
    _
  %s6 = ssub.s32 1, %s4
  %s7 = scalar_select 0, %s6, %s4
  $region1: #{tpu_custom_call.1} parent=0
    #allocation4 [shape = 'u8[65536]{0}', space=vmem, size = 0x10000, scoped, tag = 'input window, operand 0']
    #allocation5 [shape = 's32[2]{0}', space=sflag, size = 0x8, scoped, tag = 'scoped memory for tpu_custom_call.1']
    %8 = vsyncpa [#allocation5], 0
    %s9 = scalar_lea.sflag [#allocation5], 1
    %10 = vsyncpa %s9, 0
    loop: start=0, step=1, limit=4
    $region2: #{tpu_custom_call.1} parent=1 // loop_pre_header
      _
    $region3: #{tpu_custom_call.1} parent=1 // loop_header
      %s12 = sphi 0, %s16
      %p13 = scmp.ge.s32.totalorder %s12, 4
      %s19 = sphi 0, %s31
      %s20 = sphi 0, %s27
      %s21 = sphi 0, %s19
      %s22 = sphi 0, %s20
      %s23 = sphi 0, %s21
      %s24 = sphi 0, %s22
      %s36 = sphi 0, %s38
      %s39 = sphi 0, %s36
      %s40 = sphi 0, %s39
      %s56 = sphi 0, %s40
      %s60 = sphi 0, %s60
      %s62 = sphi 0, %s60
      %s63 = sphi 0, %s62
      %s77 = sphi 0, %s63
      %s81 = sphi 0, %s81
      %s83 = sphi 0, %s81
      %s84 = sphi 0, %s83
      %s98 = sphi 0, %s84
      %s104 = sphi 0, %s106
      %s107 = sphi 0, %s104
      %s108 = sphi 0, %s107
      %s124 = sphi 0, %s108
    $region4: #{tpu_custom_call.1} parent=1 // loop_header_branch
      %15 = sbr.rel (%p13) target = $region8
    $region5: #{tpu_custom_call.1} parent=1 // loop_body
      %s17 = ssub.s32 %s12, 1
      %s18 = ssub.s32 %s12, 2
      %s25 = sadd.s32 1, %s20
      %p26 = scmp.ge.s32.totalorder %s25, 1
      %s27 = scalar_select %p26, 0, %s25
      %s28 = sadd.s32 1, %s19
      %s29 = scalar_select %p26, %s28, %s19
      %p30 = scmp.ge.s32.totalorder %s29, 2
      %s31 = scalar_select %p30, 0, %s29
      %s32 = ssub.s32 %s19, %s31
      %s33 = ssub.s32 %s20, %s27
      %s34 = sor.u32 %s32, %s33
      %p35 = scmp.eq.s32.totalorder %s34, 0
      %s37 = sadd.s32 %s36, 1
      %s38 = scalar_select %p35, %s36, %s37
      %p41 = pneg %p35
      %p42 = scmp.eq.s32.totalorder %s12, 1
      %p43 = por %p41, %p42
      %p44 = scmp.ne.s32.totalorder %s36, %s39
      %p45 = scmp.eq.s32.totalorder %s12, 0
      %p46 = por %p44, %p45
      %p47 = scmp.ne.s32.totalorder %s36, %s39
      %p48 = scmp.eq.s32.totalorder %s17, 1
      %p49 = por %p47, %p48
      %p50 = scmp.ne.s32.totalorder %s39, %s40
      %p51 = scmp.eq.s32.totalorder %s17, 0
      %p52 = por %p50, %p51
      %p53 = scmp.ne.s32.totalorder %s39, %s40
      %p54 = scmp.eq.s32.totalorder %s18, 1
      %p55 = por %p53, %p54
      %p57 = scmp.ne.s32.totalorder %s40, %s56
      %p58 = scmp.eq.s32.totalorder %s18, 0
      %p59 = por %p57, %p58
      %s61 = sadd.s32 %s60, 1
      %p64 = scmp.eq.s32.totalorder %s12, 1
      %p65 = scmp.ne.s32.totalorder %s60, %s62
      %p66 = scmp.eq.s32.totalorder %s12, 0
      %p67 = por %p65, %p66
      %p68 = scmp.ne.s32.totalorder %s60, %s62
      %p69 = scmp.eq.s32.totalorder %s17, 1
      %p70 = por %p68, %p69
      %p71 = scmp.ne.s32.totalorder %s62, %s63
      %p72 = scmp.eq.s32.totalorder %s17, 0
      %p73 = por %p71, %p72
      %p74 = scmp.ne.s32.totalorder %s62, %s63
      %p75 = scmp.eq.s32.totalorder %s18, 1
      %p76 = por %p74, %p75
      %p78 = scmp.ne.s32.totalorder %s63, %s77
      %p79 = scmp.eq.s32.totalorder %s18, 0
      %p80 = por %p78, %p79
      %s82 = sadd.s32 %s81, 1
      %p85 = scmp.eq.s32.totalorder %s12, 1
      %p86 = scmp.ne.s32.totalorder %s81, %s83
      %p87 = scmp.eq.s32.totalorder %s12, 0
      %p88 = por %p86, %p87
      %p89 = scmp.ne.s32.totalorder %s81, %s83
      %p90 = scmp.eq.s32.totalorder %s17, 1
      %p91 = por %p89, %p90
      %p92 = scmp.ne.s32.totalorder %s83, %s84
      %p93 = scmp.eq.s32.totalorder %s17, 0
      %p94 = por %p92, %p93
      %p95 = scmp.ne.s32.totalorder %s83, %s84
      %p96 = scmp.eq.s32.totalorder %s18, 1
      %p97 = por %p95, %p96
      %p99 = scmp.ne.s32.totalorder %s84, %s98
      %p100 = scmp.eq.s32.totalorder %s18, 0
      %p101 = por %p99, %p100
      %s102 = ssub.s32 %s19, %s31
      %p103 = scmp.eq.s32.totalorder %s102, 0
      %s105 = sadd.s32 %s104, 1
      %s106 = scalar_select %p103, %s104, %s105
      %p109 = pneg %p103
      %p110 = scmp.eq.s32.totalorder %s12, 1
      %p111 = por %p109, %p110
      %p112 = scmp.ne.s32.totalorder %s104, %s107
      %p113 = scmp.eq.s32.totalorder %s12, 0
      %p114 = por %p112, %p113
      %p115 = scmp.ne.s32.totalorder %s104, %s107
      %p116 = scmp.eq.s32.totalorder %s17, 1
      %p117 = por %p115, %p116
      %p118 = scmp.ne.s32.totalorder %s107, %s108
      %p119 = scmp.eq.s32.totalorder %s17, 0
      %p120 = por %p118, %p119
      %p121 = scmp.ne.s32.totalorder %s107, %s108
      %p122 = scmp.eq.s32.totalorder %s18, 1
      %p123 = por %p121, %p122
      %p125 = scmp.ne.s32.totalorder %s108, %s124
      %p126 = scmp.eq.s32.totalorder %s18, 0
      %p127 = por %p125, %p126
      %p128 = scmp.le.s32.totalorder 1, %s12
      %p129 = scmp.lt.s32.totalorder %s12, 3
      %p130 = pnand %p128, %p129
      %p131 = pneg %p130
      // Predicated region
      $region9: #{tpu_custom_call.1} parent=5 // pred_check
        _
      $region10: #{tpu_custom_call.1} parent=5 // pred_check_branch
        %133 = sbr.rel (%p130) target = $region12
      $region11: #{tpu_custom_call.1} parent=5 // pred_region
        %s134 = ssub.s32 %s12, 1
        // Predicated region
        $region13: #{tpu_custom_call.1} parent=11 // pred_check
          %p135 = pneg %p73
        $region14: #{tpu_custom_call.1} parent=11 // pred_check_branch
          %137 = sbr.rel (%p135) target = $region16
        $region15: #{tpu_custom_call.1} parent=11 // pred_region
          _
        $region16: #{tpu_custom_call.1} parent=11 // pred_fallthru
          _
        // Predicated region
        $region17: #{tpu_custom_call.1} parent=11 // pred_check
          %p138 = pneg %p94
        $region18: #{tpu_custom_call.1} parent=11 // pred_check_branch
          %140 = sbr.rel (%p138) target = $region20
        $region19: #{tpu_custom_call.1} parent=11 // pred_region
          _
        $region20: #{tpu_custom_call.1} parent=11 // pred_fallthru
          _
      $region12: #{tpu_custom_call.1} parent=5 // pred_fallthru
        _
      %p141 = scmp.lt.s32.totalorder %s12, 2
      // Predicated region
      $region21: #{tpu_custom_call.1} parent=5 // pred_check
        %p142 = pneg %p141
      $region22: #{tpu_custom_call.1} parent=5 // pred_check_branch
        %144 = sbr.rel (%p142) target = $region24
      $region23: #{tpu_custom_call.1} parent=5 // pred_region
        // Predicated region
        $region25: #{tpu_custom_call.1} parent=23 // pred_check
          %p145 = pneg %p46
        $region26: #{tpu_custom_call.1} parent=23 // pred_check_branch
          %147 = sbr.rel (%p145) target = $region28
        $region27: #{tpu_custom_call.1} parent=23 // pred_region
          %s148 = sand.u32 %s36, 1
          %s149 = scalar_lea.sflag [#allocation5], %s148
          %s150 = sand.u32 %s36, 1
          %s151 = smul.addr %s150, 64
          %s152 = scalar_lea.vmem [#allocation4], %s151
          %s153 = smul.u32 2, %s20
          %155 = vsyncadd %s149, 0
          %s156 = smul.addr %s19, 8
          %s157 = sadd.s32 %s153, %s156
          %s158 = smul.addr %s157, 8
          %s159 = scalar_lea.hbm %s0, %s158
          %s160 = sshll.u32 %s159, 4
          %s161 = int_to_ptr.hbm [resolvable:$true] %s160
          %s162 = sshll.u32 %s152, 4
          %s163 = int_to_ptr.vmem [resolvable:$true] %s162
          %168 = dma.hbm_to_vmem [thread:$0]  %s161, 1024, %s163, %s149, 256, 256, 16
        $region28: #{tpu_custom_call.1} parent=23 // pred_fallthru
          _
      $region24: #{tpu_custom_call.1} parent=5 // pred_fallthru
        _
      %p169 = scmp.le.s32.totalorder 1, %s12
      %p170 = scmp.lt.s32.totalorder %s12, 3
      %p171 = pnand %p169, %p170
      %p172 = pneg %p171
      // Predicated region
      $region29: #{tpu_custom_call.1} parent=5 // pred_check
        _
      $region30: #{tpu_custom_call.1} parent=5 // pred_check_branch
        %174 = sbr.rel (%p171) target = $region32
      $region31: #{tpu_custom_call.1} parent=5 // pred_region
        %s175 = ssub.s32 %s12, 1
        %s176 = sand.u32 %s39, 1
        %s177 = scalar_lea.sflag [#allocation5], %s176
        %s178 = sand.u32 %s39, 1
        %s179 = smul.addr %s178, 64
        %s180 = scalar_lea.vmem [#allocation4], %s179
        // Predicated region
        $region33: #{tpu_custom_call.1} parent=31 // pred_check
          %p181 = pneg %p52
        $region34: #{tpu_custom_call.1} parent=31 // pred_check_branch
          %183 = sbr.rel (%p181) target = $region36
        $region35: #{tpu_custom_call.1} parent=31 // pred_region
          %185 = dma.done %s177, 1024
        $region36: #{tpu_custom_call.1} parent=31 // pred_fallthru
          _
        %s186 = sand.u32 %s39, 1
        %s187 = scalar_lea.sflag [#allocation5], %s186
        %s188 = sand.u32 %s39, 1
        %s189 = smul.addr %s188, 64
        %s190 = scalar_lea.vmem [#allocation4], %s189
        %p191 = pneg %p52
        %p192 = pneg %p49
        %p193 = pneg %p73
        %p194 = pneg %p70
        %p195 = pneg %p94
        %p196 = pneg %p91
        %p197 = pneg %p120
        %p198 = pneg %p117
        %p199 = scmp.lt.s32.totalorder %s21, 1
        %s200 = scalar_select %p199, %s21, 1
        %s201 = smul.addr %s200, 4
        %s202 = smul.addr %s201, 8
        %s203 = scalar_lea.vmem %s3, %s202
        %s204 = smul.u32 2, %s22
        %p205 = scmp.lt.s32.totalorder %s21, 1
        %s206 = scalar_select %p205, %s21, 1
        %s207 = smul.addr %s206, 4
        %s208 = smul.addr %s207, 8
        %s209 = scalar_lea.vmem %s3, %s208
        %p210 = scmp.eq.s32.totalorder %s22, 0
        // Predicated region
        $region37: #{tpu_custom_call.1} parent=31 // pred_check
          %p211 = pneg %p210
        $region38: #{tpu_custom_call.1} parent=31 // pred_check_branch
          %213 = sbr.rel (%p211) target = $region40
        $region39: #{tpu_custom_call.1} parent=31 // pred_region
          %vm214 = vcmask 7168
          %215 = vst.msk [vmem:[#allocation2] sm:$0xff] %vm214, 0.0
          %216 = vst.msk [vmem:[#allocation2 + $0x8] sm:$0xff] %vm214, 0.0
          %217 = vst.msk [vmem:[#allocation2 + $0x10] sm:$0xff] %vm214, 0.0
          %218 = vst.msk [vmem:[#allocation2 + $0x18] sm:$0xff] %vm214, 0.0
          %219 = vst.msk [vmem:[#allocation3] sm:$0xff] %vm214, -inf
          %220 = vst.msk [vmem:[#allocation3 + $0x8] sm:$0xff] %vm214, -inf
          %221 = vst.msk [vmem:[#allocation3 + $0x10] sm:$0xff] %vm214, -inf
          %222 = vst.msk [vmem:[#allocation3 + $0x18] sm:$0xff] %vm214, -inf
        $region40: #{tpu_custom_call.1} parent=31 // pred_fallthru
          _
        %v223 = vld [vmem:[%s180] sm:$0xff]
        %v224 = vld [vmem:[%s180 + $0x8] sm:$0xff]
        %v225 = vld [vmem:[%s180 + $0x10] sm:$0xff]
        %v226 = vld [vmem:[%s180 + $0x18] sm:$0xff]
        %v227 = vld [vmem:[%s180 + $0x20] sm:$0xff]
        %v228 = vld [vmem:[%s180 + $0x28] sm:$0xff]
        %v229 = vld [vmem:[%s180 + $0x30] sm:$0xff]
        %v230 = vld [vmem:[%s180 + $0x38] sm:$0xff]
        %v231 = vld [vmem:[#allocation2] sm:$0xff]
        %v232 = vld [vmem:[#allocation2 + $0x8] sm:$0xff]
        %v233 = vld [vmem:[#allocation2 + $0x10] sm:$0xff]
        %v234 = vld [vmem:[#allocation2 + $0x18] sm:$0xff]
        %v235 = vadd.f32 %v223, %v224
        %236 = vadd.xlane.f32.xlu0 %v235
        %v237 = vpop.xlane.xlu0 %236
        %v238 = vadd.f32 %v225, %v226
        %239 = vadd.xlane.f32.xlu0 %v238
        %v240 = vpop.xlane.xlu0 %239
        %v241 = vadd.f32 %v227, %v228
        %242 = vadd.xlane.f32.xlu0 %v241
        %v243 = vpop.xlane.xlu0 %242
        %v244 = vadd.f32 %v229, %v230
        %245 = vadd.xlane.f32.xlu0 %v244
        %v246 = vpop.xlane.xlu0 %245
        %v247 = vadd.f32 %v231, %v237
        %v248 = vadd.f32 %v232, %v240
        %v249 = vadd.f32 %v233, %v243
        %v250 = vadd.f32 %v234, %v246
        %vm251 = vcmask 7168
        %252 = vst.msk [vmem:[#allocation2] sm:$0xff] %vm251, %v247
        %253 = vst.msk [vmem:[#allocation2 + $0x8] sm:$0xff] %vm251, %v248
        %254 = vst.msk [vmem:[#allocation2 + $0x10] sm:$0xff] %vm251, %v249
        %255 = vst.msk [vmem:[#allocation2 + $0x18] sm:$0xff] %vm251, %v250
        %v256 = vld [vmem:[#allocation3] sm:$0xff]
        %v257 = vld [vmem:[#allocation3 + $0x8] sm:$0xff]
        %v258 = vld [vmem:[#allocation3 + $0x10] sm:$0xff]
        %v259 = vld [vmem:[#allocation3 + $0x18] sm:$0xff]
        %v260 = vmax.f32 %v223, %v224
        %261 = vmax.xlane.f32.xlu0 %v260
        %v262 = vpop.xlane.xlu0 %261
        %v263 = vmax.f32 %v225, %v226
        %264 = vmax.xlane.f32.xlu0 %v263
        %v265 = vpop.xlane.xlu0 %264
        %v266 = vmax.f32 %v227, %v228
        %267 = vmax.xlane.f32.xlu0 %v266
        %v268 = vpop.xlane.xlu0 %267
        %v269 = vmax.f32 %v229, %v230
        %270 = vmax.xlane.f32.xlu0 %v269
        %v271 = vpop.xlane.xlu0 %270
        %v272 = vmax.f32 %v256, %v262
        %v273 = vmax.f32 %v257, %v265
        %v274 = vmax.f32 %v258, %v268
        %v275 = vmax.f32 %v259, %v271
        %276 = vst.msk [vmem:[#allocation3] sm:$0xff] %vm251, %v272
        %277 = vst.msk [vmem:[#allocation3 + $0x8] sm:$0xff] %vm251, %v273
        %278 = vst.msk [vmem:[#allocation3 + $0x10] sm:$0xff] %vm251, %v274
        %279 = vst.msk [vmem:[#allocation3 + $0x18] sm:$0xff] %vm251, %v275
        // Predicated region
        $region41: #{tpu_custom_call.1} parent=31 // pred_check
          %p280 = pneg %p210
        $region42: #{tpu_custom_call.1} parent=31 // pred_check_branch
          %282 = sbr.rel (%p280) target = $region44
        $region43: #{tpu_custom_call.1} parent=31 // pred_region
          %v283 = vld [vmem:[#allocation2] sm:$0xff]
          %v284 = vld [vmem:[#allocation2 + $0x8] sm:$0xff]
          %v285 = vld [vmem:[#allocation2 + $0x10] sm:$0xff]
          %v286 = vld [vmem:[#allocation2 + $0x18] sm:$0xff]
          %v287 = vmul.f32 %v283, 0.00390625
          %v288 = vmul.f32 %v284, 0.00390625
          %v289 = vmul.f32 %v285, 0.00390625
          %v290 = vmul.f32 %v286, 0.00390625
          %v291 = vld [vmem:[#allocation3] sm:$0xff]
          %v292 = vld [vmem:[#allocation3 + $0x8] sm:$0xff]
          %v293 = vld [vmem:[#allocation3 + $0x10] sm:$0xff]
          %v294 = vld [vmem:[#allocation3 + $0x18] sm:$0xff]
          %299 = vrot.lane.b32.xlu0 %v287, 1
          %v300 = vpop.permute.xlu0 %299
          %301 = vrot.lane.b32.xlu0 %v288, 1
          %v302 = vpop.permute.xlu0 %301
          %303 = vrot.lane.b32.xlu0 %v289, 1
          %v304 = vpop.permute.xlu0 %303
          %305 = vrot.lane.b32.xlu0 %v290, 1
          %v306 = vpop.permute.xlu0 %305
          %v311 = vsel %vm251, %v291, %v300
          %v312 = vsel %vm251, %v292, %v302
          %v313 = vsel %vm251, %v293, %v304
          %v314 = vsel %vm251, %v294, %v306
          %v315 = vld [vmem:[%s1] sm:$0xf]
          %v316 = vld [vmem:[%s2] sm:$0xff]
          %v317 = vld [vmem:[%s2 + $0x8] sm:$0xff]
          %v318 = vld [vmem:[%s2 + $0x10] sm:$0xff]
          %v319 = vld [vmem:[%s2 + $0x18] sm:$0xff]
          %vm320 = vcmask 261120
          %v322 = vsel %vm320, %v315, 0
          %324 = vmatpush.msra.mxu0 0.0
          %325 = vmatpush.msra.mxu0 0.0
          %326 = vmatpush.msra.mxu0 0.0
          %327 = vmatpush.msra.mxu0 0.0
          %328 = vmatpush.msra.mxu0 0.0
          %329 = vmatpush.msra.mxu0 0.0
          %330 = vmatpush.msra.mxu0 0.0
          %331 = vmatpush.msra.mxu0 0.0
          %332 = vmatpush.msra.mxu0 0.0
          %333 = vmatpush.msra.mxu0 0.0
          %334 = vmatpush.msra.mxu0 0.0
          %335 = vmatpush.msra.mxu0 0.0
          %336 = vmatpush.msra.mxu0 %v314
          %337 = vmatpush.msra.mxu0 %v313
          %338 = vmatpush.msra.mxu0 %v312
          %339 = vmatpush.msra.mxu0 %v311
          %340 = vmatmul.f32.gmra.mxu0 %v322
          %v341 = vpop.f32.mrf.mxu0
          %v342 = vadd.f32 0.0, %v341
          %343 = vdwg.mxu0
          %v344 = vmax.f32 %v342, 0.0
          %vm345 = vcmask 31744
          %v347 = vsel %vm345, %v316, 0
          %v350 = vsel %vm345, %v317, 0
          %v353 = vsel %vm345, %v318, 0
          %v356 = vsel %vm345, %v319, 0
          %vm358 = vcmask 1043456
          %v360 = vsel %vm358, %v344, 0
          %362 = vmatpush.msra.mxu0 0.0
          %363 = vmatpush.msra.mxu0 0.0
          %364 = vmatpush.msra.mxu0 0.0
          %365 = vmatpush.msra.mxu0 0.0
          %366 = vmatpush.msra.mxu0 0.0
          %367 = vmatpush.msra.mxu0 0.0
          %368 = vmatpush.msra.mxu0 0.0
          %369 = vmatpush.msra.mxu0 0.0
          %370 = vmatpush.msra.mxu0 0.0
          %371 = vmatpush.msra.mxu0 0.0
          %372 = vmatpush.msra.mxu0 0.0
          %373 = vmatpush.msra.mxu0 0.0
          %374 = vmatpush.msra.mxu0 0.0
          %375 = vmatpush.msra.mxu0 0.0
          %376 = vmatpush.msra.mxu0 0.0
          %377 = vmatpush.msra.mxu0 %v360
          %378 = vmatmul.f32.gmra.mxu0 %v347
          %v379 = vpop.f32.mrf.mxu0
          %v380 = vadd.f32 0.0, %v379
          %381 = vmatmul.f32.gmra.mxu0 %v350
          %v382 = vpop.f32.mrf.mxu0
          %v383 = vadd.f32 0.0, %v382
          %384 = vmatmul.f32.gmra.mxu0 %v353
          %v385 = vpop.f32.mrf.mxu0
          %v386 = vadd.f32 0.0, %v385
          %387 = vmatmul.f32.gmra.mxu0 %v356
          %v388 = vpop.f32.mrf.mxu0
          %v389 = vadd.f32 0.0, %v388
          %390 = vdwg.mxu0
          %395 = vrot.lane.b32.xlu0 %v380, 127
          %v396 = vpop.permute.xlu0 %395
          %397 = vrot.lane.b32.xlu0 %v383, 127
          %v398 = vpop.permute.xlu0 %397
          %399 = vrot.lane.b32.xlu0 %v386, 127
          %v400 = vpop.permute.xlu0 %399
          %401 = vrot.lane.b32.xlu0 %v389, 127
          %v402 = vpop.permute.xlu0 %401
          %v407 = vadd.f32 %v380, %v396
          %v408 = vadd.f32 %v383, %v398
          %v409 = vadd.f32 %v386, %v400
          %v410 = vadd.f32 %v389, %v402
          %v411 = vxor.u32 %v407, 2147483648
          %v412 = vxor.u32 %v408, 2147483648
          %v413 = vxor.u32 %v409, 2147483648
          %v414 = vxor.u32 %v410, 2147483648
          %v415 = vmul.f32 %v411, 1.442695
          %v416 = vpow.pop %v415
          %v417 = vmul.f32 %v412, 1.442695
          %v418 = vpow.pop %v417
          %v419 = vmul.f32 %v413, 1.442695
          %v420 = vpow.pop %v419
          %v421 = vmul.f32 %v414, 1.442695
          %v422 = vpow.pop %v421
          %v423 = vadd.f32 %v416, 1.0
          %v424 = vadd.f32 %v418, 1.0
          %v425 = vadd.f32 %v420, 1.0
          %v426 = vadd.f32 %v422, 1.0
          %v427 = vrcp.pop %v423
          %v428 = vmul.f32 %v423, %v427
          %v429 = vsub.f32 1.0, %v428
          %v430 = vmul.f32 %v427, %v429
          %v431 = vadd.f32 %v427, %v430
          %vm432 = vweird.f32 %v423
          %vm433 = vweird.f32 %v427
          %vm434 = vmor %vm432, %vm433
          %v435 = vsel %vm434, %v427, %v431
          %v436 = vand.u32 2147483647, %v423
          %vm437 = vcmp.eq.f32.partialorder %v436, 8.507059e+37
          %v438 = vand.u32 %v423, 2147483648
          %v439 = vor.u32 1.1754944e-38, %v438
          %v440 = vsel %vm437, %v439, %v435
          %v441 = vmul.f32 1.0, %v440
          %v442 = vrcp.pop %v424
          %v443 = vmul.f32 %v424, %v442
          %v444 = vsub.f32 1.0, %v443
          %v445 = vmul.f32 %v442, %v444
          %v446 = vadd.f32 %v442, %v445
          %vm447 = vweird.f32 %v424
          %vm448 = vweird.f32 %v442
          %vm449 = vmor %vm447, %vm448
          %v450 = vsel %vm449, %v442, %v446
          %v451 = vand.u32 2147483647, %v424
          %vm452 = vcmp.eq.f32.partialorder %v451, 8.507059e+37
          %v453 = vand.u32 %v424, 2147483648
          %v454 = vor.u32 1.1754944e-38, %v453
          %v455 = vsel %vm452, %v454, %v450
          %v456 = vmul.f32 1.0, %v455
          %v457 = vrcp.pop %v425
          %v458 = vmul.f32 %v425, %v457
          %v459 = vsub.f32 1.0, %v458
          %v460 = vmul.f32 %v457, %v459
          %v461 = vadd.f32 %v457, %v460
          %vm462 = vweird.f32 %v425
          %vm463 = vweird.f32 %v457
          %vm464 = vmor %vm462, %vm463
          %v465 = vsel %vm464, %v457, %v461
          %v466 = vand.u32 2147483647, %v425
          %vm467 = vcmp.eq.f32.partialorder %v466, 8.507059e+37
          %v468 = vand.u32 %v425, 2147483648
          %v469 = vor.u32 1.1754944e-38, %v468
          %v470 = vsel %vm467, %v469, %v465
          %v471 = vmul.f32 1.0, %v470
          %v472 = vrcp.pop %v426
          %v473 = vmul.f32 %v426, %v472
          %v474 = vsub.f32 1.0, %v473
          %v475 = vmul.f32 %v472, %v474
          %v476 = vadd.f32 %v472, %v475
          %vm477 = vweird.f32 %v426
          %vm478 = vweird.f32 %v472
          %vm479 = vmor %vm477, %vm478
          %v480 = vsel %vm479, %v472, %v476
          %v481 = vand.u32 2147483647, %v426
          %vm482 = vcmp.eq.f32.partialorder %v481, 8.507059e+37
          %v483 = vand.u32 %v426, 2147483648
          %v484 = vor.u32 1.1754944e-38, %v483
          %v485 = vsel %vm482, %v484, %v480
          %v486 = vmul.f32 1.0, %v485
          %487 = vst.msk [vmem:[%s209] sm:$0xff] %vm251, %v441
          %488 = vst.msk [vmem:[%s209 + $0x8] sm:$0xff] %vm251, %v456
          %489 = vst.msk [vmem:[%s209 + $0x10] sm:$0xff] %vm251, %v471
          %490 = vst.msk [vmem:[%s209 + $0x18] sm:$0xff] %vm251, %v486
        $region44: #{tpu_custom_call.1} parent=31 // pred_fallthru
          _
        %p491 = scmp.lt.s32.totalorder %s21, 1
        %s492 = scalar_select %p491, %s21, 1
        %s493 = smul.addr %s492, 4
        %s494 = smul.addr %s493, 8
        %s495 = scalar_lea.vmem %s3, %s494
        // Predicated region
        $region45: #{tpu_custom_call.1} parent=31 // pred_check
          %p496 = pneg %p117
        $region46: #{tpu_custom_call.1} parent=31 // pred_check_branch
          %498 = sbr.rel (%p496) target = $region48
        $region47: #{tpu_custom_call.1} parent=31 // pred_region
          _
        $region48: #{tpu_custom_call.1} parent=31 // pred_fallthru
          _
      $region32: #{tpu_custom_call.1} parent=5 // pred_fallthru
        _
      %p499 = scmp.le.s32.totalorder 2, %s12
      // Predicated region
      $region49: #{tpu_custom_call.1} parent=5 // pred_check
        %p500 = pneg %p499
      $region50: #{tpu_custom_call.1} parent=5 // pred_check_branch
        %502 = sbr.rel (%p500) target = $region52
      $region51: #{tpu_custom_call.1} parent=5 // pred_region
        %s503 = ssub.s32 %s12, 2
        // Predicated region
        $region53: #{tpu_custom_call.1} parent=51 // pred_check
          %p504 = pneg %p123
        $region54: #{tpu_custom_call.1} parent=51 // pred_check_branch
          %506 = sbr.rel (%p504) target = $region56
        $region55: #{tpu_custom_call.1} parent=51 // pred_region
          %p507 = scmp.lt.s32.totalorder %s23, 1
          %s508 = scalar_select %p507, %s23, 1
          %s509 = smul.addr %s508, 4
          %s510 = smul.addr %s509, 8
          %s511 = scalar_lea.vmem %s3, %s510
        $region56: #{tpu_custom_call.1} parent=51 // pred_fallthru
          _
      $region52: #{tpu_custom_call.1} parent=5 // pred_fallthru
        _
    $region6: #{tpu_custom_call.1} parent=1 // loop_footer
      %s16 = sadd.s32 1, %s12
    $region7: #{tpu_custom_call.1} parent=1 // loop_footer_branch
      %11 = sbr.rel target = $region3
    $region8: #{tpu_custom_call.1} parent=1 // loop_exit
      _
    %512 = vsyncpa [#allocation5], 1
    %s513 = scalar_lea.sflag [#allocation5], 1
    %514 = vsyncpa %s513, 1

</llo_original>
